<compile_context>
chip_gen: v6e
topology: v6e:2x2x1
jax: 0.10.0
libtpu: 0.0.40
codegen_flags: <defaults>
</compile_context>

<pallas_src>
import jax
import jax.numpy as jnp
from jax.experimental import pallas as pl
from jax.experimental.pallas import tpu as pltpu


def _make_se_kernel(inv_hw):
    """inv_hw = 1 / (true H*W); baked in as a compile-time constant."""

    def _se_kernel(x_ref, w1_ref, b1_ref, w2_ref, b2_ref, o_ref):
        # x_ref / o_ref: (Bb, C, HW) block (full channels, full spatial extent).
        # Squeeze: global average pool.  Sum in f32, multiply by 1/HW (no
        # divide).  Read x_ref here and again at the scale step instead of
        # binding the whole multi-MiB tile once.
        pooled = jnp.sum(x_ref[...], axis=2, dtype=jnp.float32) * inv_hw  # (Bb, C)

        # Excitation: FC -> ReLU -> FC -> Sigmoid, all f32, M = Bb on the MXU.
        h = jnp.dot(pooled, w1_ref[...],
                    preferred_element_type=jnp.float32) + b1_ref[...]     # (Bb, Cr)
        h = jnp.maximum(h, 0.0)
        s = jnp.dot(h, w2_ref[...],
                    preferred_element_type=jnp.float32) + b2_ref[...]     # (Bb, C)
        s = jax.nn.sigmoid(s)

        # Scale: broadcast channel gates over the spatial (lane) axis.  Keep
        # the big multiply in the input dtype (no f32 upcast of the tile).
        gate = s[:, :, None].astype(o_ref.dtype)
        o_ref[...] = (x_ref[...] * gate).astype(o_ref.dtype)

    return _se_kernel


def _chip_info():
    """Return (is_v7x, physical VMEM bytes) with conservative fallbacks."""
    kind = ""
    try:
        kind = jax.devices()[0].device_kind.lower()
    except Exception:
        pass
    is_v7 = ("v7" in kind) or ("tpu7" in kind)
    vmem_cap = 64 * 1024 * 1024 if is_v7 else 128 * 1024 * 1024
    try:  # prefer the real number when the query is available
        vmem_cap = int(pltpu.get_tpu_info().vmem_capacity_bytes)
    except Exception:
        pass
    return is_v7, vmem_cap


def se_layer(x, w1, b1, w2, b2, *, target_tile_bytes=None, alias_input=False):
    """x: (B, C, H, W). w1: (C, Cr), b1: (Cr,), w2: (Cr, C), b2: (C,).

    Set alias_input=True only when x can be donated: its HBM buffer is reused
    for the output and must not be consumed again by the caller.
    """
    B, C, H, W = x.shape
    HW = H * W
    Cr = w1.shape[1]
    itemsize = jnp.dtype(x.dtype).itemsize

    is_v7, vmem_cap = _chip_info()
    if target_tile_bytes is None:
        # v7x: larger tiles to amortize the fixed per-step cost at 3.2 TB/s.
        target_tile_bytes = (6 if is_v7 else 2) * 1024 * 1024

    # No spatial padding: the last block dim equals the full HW (exempt from
    # 128-divisibility); the ragged lane tail becomes masked in-kernel stores,
    # avoiding the pad + slice extra HBM passes of the previous version.
    x_flat = x.reshape(B, C, HW)

    # Per-batch VMEM footprint uses the (8, 128)-padded tile size.
    c_pad = ((C + 7) // 8) * 8
    hw_pad = ((HW + 127) // 128) * 128
    per_batch_vmem = c_pad * hw_pad * itemsize

    # Batch block from the byte budget; no divisor-of-B requirement (cdiv grid
    # plus a masked partial last block handles the remainder).
    Bb = max(1, target_tile_bytes // per_batch_vmem)
    if is_v7 and B > 1:
        # Keep >= 2 grid steps only where there are 2 TensorCores to shard on.
        Bb = min(Bb, pl.cdiv(B, 2))
    Bb = min(Bb, B)

    # VMEM guard: double-buffered input + output tiles plus resident weights
    # must stay well inside physical VMEM (64 MiB on v7x, 128 MiB v5e/v6e).
    weight_bytes = sum(int(a.size) * jnp.dtype(a.dtype).itemsize
                       for a in (w1, b1, w2, b2))
    vmem_budget = min(48 * 1024 * 1024, vmem_cap - 16 * 1024 * 1024)
    Bb = max(1, min(Bb, vmem_budget // (4 * per_batch_vmem)))
    # TODO(synk): if a single batch element (Bb=1) still exceeds the VMEM
    # budget (very large C*H*W, e.g. early-layer 224x224 maps on v7x), fall
    # back to a spatially-tiled two-phase variant (pool pass + scale pass).

    footprint = 4 * Bb * per_batch_vmem + 2 * weight_bytes + (4 << 20)
    vmem_limit = int(min(max(footprint, 32 << 20), vmem_cap - (8 << 20)))

    grid = (pl.cdiv(B, Bb),)

    b1_2d = b1.reshape(1, Cr)
    b2_2d = b2.reshape(1, C)
    inv_hw = 1.0 / float(HW)

    out_flat = pl.pallas_call(
        _make_se_kernel(inv_hw),
        out_shape=jax.ShapeDtypeStruct((B, C, HW), x.dtype),
        grid_spec=pltpu.PrefetchScalarGridSpec(
            num_scalar_prefetch=0,
            grid=grid,
            in_specs=[
                pl.BlockSpec((Bb, C, HW), lambda b: (b, 0, 0)),  # x tile
                pl.BlockSpec((C, Cr), lambda b: (0, 0)),          # w1 (resident)
                pl.BlockSpec((1, Cr), lambda b: (0, 0)),          # b1
                pl.BlockSpec((Cr, C), lambda b: (0, 0)),          # w2
                pl.BlockSpec((1, C), lambda b: (0, 0)),           # b2
            ],
            out_specs=pl.BlockSpec((Bb, C, HW), lambda b: (b, 0, 0)),
        ),
        compiler_params=pltpu.CompilerParams(
            dimension_semantics=("parallel",),
            vmem_limit_bytes=vmem_limit,
        ),
        input_output_aliases=({0: 0} if alias_input else {}),
    )(x_flat, w1, b1_2d, w2, b2_2d)

    return out_flat.reshape(B, C, H, W)


def se_layer_ref(x, w1, b1, w2, b2):
    """Pure-JAX reference mirroring the PyTorch forward."""
    token = jnp.mean(x, axis=(2, 3))                  # (B, C)
    h = jnp.maximum(token @ w1 + b1, 0.0)             # (B, Cr)
    s = jax.nn.sigmoid(h @ w2 + b2)                   # (B, C)
    return x * s[:, :, None, None]


def _make_params(key, C, reduction):
    Cr = C // reduction
    k1, k2, k3, k4 = jax.random.split(key, 4)
    # nn.Linear(C, Cr): weight (Cr, C), bias (Cr,).  Stored transposed for
    # right-multiplication: w1 (C, Cr), w2 (Cr, C).
    bound1 = 1.0 / (C ** 0.5)
    bound2 = 1.0 / (Cr ** 0.5)
    w1 = jax.random.uniform(k1, (C, Cr), jnp.float32, -bound1, bound1)
    b1 = jax.random.uniform(k2, (Cr,), jnp.float32, -bound1, bound1)
    w2 = jax.random.uniform(k3, (Cr, C), jnp.float32, -bound2, bound2)
    b2 = jax.random.uniform(k4, (C,), jnp.float32, -bound2, bound2)
    return w1, b1, w2, b2


if __name__ == "__main__":
    key = jax.random.PRNGKey(0)
    kx1, kx2, kx3, kp = jax.random.split(key, 4)

    C, reduction = 32, 16
    w1, b1, w2, b2 = _make_params(kp, C, reduction)

    # Case 1: 128-aligned HW, even B (fully unmasked store path).
    x1 = jax.random.normal(kx1, (4, C, 16, 16), dtype=jnp.float32)
    out1 = se_layer(x1, w1, b1, w2, b2)
    jax.block_until_ready(out1)
    ref1 = se_layer_ref(x1, w1, b1, w2, b2)
    assert out1.shape == x1.shape
    assert jnp.allclose(out1, ref1, atol=1e-5, rtol=1e-5)

    # Case 2: HW = 49 (ragged lane tail -> masked stores, no pad/slice) plus
    # odd B with a forced small Bb so the partial last batch block runs.
    x2 = jax.random.normal(kx2, (3, C, 7, 7), dtype=jnp.float32)
    small_tile = 2 * ((C + 7) // 8) * 8 * 128 * 4      # -> Bb = 2, grid = (2,)
    out2 = se_layer(x2, w1, b1, w2, b2, target_tile_bytes=small_tile)
    jax.block_until_ready(out2)
    ref2 = se_layer_ref(x2, w1, b1, w2, b2)
    assert out2.shape == x2.shape
    assert jnp.allclose(out2, ref2, atol=1e-5, rtol=1e-5)

    # Case 3: input/output aliasing (reference computed first; x3 is not used
    # again afterwards, so reusing its buffer is safe).
    x3 = jax.random.normal(kx3, (5, C, 9, 9), dtype=jnp.float32)
    ref3 = se_layer_ref(x3, w1, b1, w2, b2)
    out3 = se_layer(x3, w1, b1, w2, b2, alias_input=True)
    jax.block_until_ready(out3)
    assert out3.shape == x3.shape
    assert jnp.allclose(out3, ref3, atol=1e-5, rtol=1e-5)

    print("KERNEL_OK")
</pallas_src>

<mosaic_0001>
module attributes {stable_mosaic.version = 11 : i64} {
  func.func @_se_kernel(%arg0: i32, %arg1: memref<4x32x256xf32, #tpu.memory_space<vmem>>, %arg2: memref<32x2xf32, #tpu.memory_space<vmem>>, %arg3: memref<1x2xf32, #tpu.memory_space<vmem>>, %arg4: memref<2x32xf32, #tpu.memory_space<vmem>>, %arg5: memref<1x32xf32, #tpu.memory_space<vmem>>, %arg6: memref<4x32x256xf32, #tpu.memory_space<vmem>>) attributes {dimension_semantics = [#tpu.dimension_semantics<parallel>], iteration_bounds = array<i64: 1>, scalar_prefetch = 0 : i64, scratch_operands = 0 : i64, tpu.core_type = #tpu.core_type<tc>, window_params = [{transform_indices = @transform_0, window_bounds = array<i64: 4, 32, 256>}, {pipeline_mode = #tpu.pipeline_mode<synchronous>, transform_indices = @transform_1, window_bounds = array<i64: 32, 2>}, {pipeline_mode = #tpu.pipeline_mode<synchronous>, transform_indices = @transform_2, window_bounds = array<i64: 1, 2>}, {pipeline_mode = #tpu.pipeline_mode<synchronous>, transform_indices = @transform_3, window_bounds = array<i64: 2, 32>}, {pipeline_mode = #tpu.pipeline_mode<synchronous>, transform_indices = @transform_4, window_bounds = array<i64: 1, 32>}, {transform_indices = @transform_5, window_bounds = array<i64: 4, 32, 256>}]} {
    %c0 = arith.constant 0 : index
    %c0_0 = arith.constant 0 : index
    %c0_1 = arith.constant 0 : index
    %0 = vector.load %arg1[%c0, %c0_0, %c0_1] : memref<4x32x256xf32, #tpu.memory_space<vmem>>, vector<4x32x256xf32>
    %cst = arith.constant dense<0.000000e+00> : vector<4x32xf32>
    %1 = vector.multi_reduction <add>, %0, %cst [2] : vector<4x32x256xf32> to vector<4x32xf32>
    %cst_2 = arith.constant 3.906250e-03 : f32
    %2 = vector.broadcast %cst_2 : f32 to vector<4x32xf32>
    %3 = arith.mulf %1, %2 : vector<4x32xf32>
    %c0_3 = arith.constant 0 : index
    %c0_4 = arith.constant 0 : index
    %4 = vector.load %arg2[%c0_3, %c0_4] : memref<32x2xf32, #tpu.memory_space<vmem>>, vector<32x2xf32>
    %cst_5 = arith.constant dense<0.000000e+00> : vector<4x2xf32>
    %5 = tpu.matmul %3, %4, %cst_5 {dimension_numbers = #tpu.dot_dimension_numbers<[1], [0], [0], [1], [0, 0, 1, 1], [], []>} : vector<4x32xf32>, vector<32x2xf32>, vector<4x2xf32> -> vector<4x2xf32>
    %c0_6 = arith.constant 0 : index
    %c0_7 = arith.constant 0 : index
    %6 = vector.load %arg3[%c0_6, %c0_7] : memref<1x2xf32, #tpu.memory_space<vmem>>, vector<1x2xf32>
    %7 = vector.broadcast %6 : vector<1x2xf32> to vector<4x2xf32>
    %8 = arith.addf %5, %7 : vector<4x2xf32>
    %cst_8 = arith.constant 0.000000e+00 : f32
    %9 = vector.broadcast %cst_8 : f32 to vector<4x2xf32>
    %10 = arith.maximumf %8, %9 : vector<4x2xf32>
    %c0_9 = arith.constant 0 : index
    %c0_10 = arith.constant 0 : index
    %11 = vector.load %arg4[%c0_9, %c0_10] : memref<2x32xf32, #tpu.memory_space<vmem>>, vector<2x32xf32>
    %cst_11 = arith.constant dense<0.000000e+00> : vector<4x32xf32>
    %12 = tpu.matmul %10, %11, %cst_11 {dimension_numbers = #tpu.dot_dimension_numbers<[1], [0], [0], [1], [0, 0, 1, 1], [], []>} : vector<4x2xf32>, vector<2x32xf32>, vector<4x32xf32> -> vector<4x32xf32>
    %c0_12 = arith.constant 0 : index
    %c0_13 = arith.constant 0 : index
    %13 = vector.load %arg5[%c0_12, %c0_13] : memref<1x32xf32, #tpu.memory_space<vmem>>, vector<1x32xf32>
    %14 = vector.broadcast %13 : vector<1x32xf32> to vector<4x32xf32>
    %15 = arith.addf %12, %14 : vector<4x32xf32>
    %16 = arith.negf %15 : vector<4x32xf32>
    %17 = math.exp %16 : vector<4x32xf32>
    %cst_14 = arith.constant 1.000000e+00 : f32
    %18 = vector.broadcast %cst_14 : f32 to vector<4x32xf32>
    %19 = arith.addf %18, %17 : vector<4x32xf32>
    %20 = arith.divf %18, %19 : vector<4x32xf32>
    %21 = vector.shape_cast %20 : vector<4x32xf32> to vector<4x32x1xf32>
    %c0_15 = arith.constant 0 : index
    %c0_16 = arith.constant 0 : index
    %c0_17 = arith.constant 0 : index
    %22 = vector.load %arg1[%c0_15, %c0_16, %c0_17] : memref<4x32x256xf32, #tpu.memory_space<vmem>>, vector<4x32x256xf32>
    %23 = vector.broadcast %21 : vector<4x32x1xf32> to vector<4x32x256xf32>
    %24 = arith.mulf %22, %23 : vector<4x32x256xf32>
    %c0_18 = arith.constant 0 : index
    %c0_19 = arith.constant 0 : index
    %c0_20 = arith.constant 0 : index
    %25 = vector.load %arg6[%c0_18, %c0_19, %c0_20] : memref<4x32x256xf32, #tpu.memory_space<vmem>>, vector<4x32x256xf32>
    tpu.vector_store %arg6[%c0_18, %c0_19, %c0_20], %24 {strides = array<i32>} : memref<4x32x256xf32, #tpu.memory_space<vmem>>, vector<4x32x256xf32>,
    return
  }
  func.func @transform_0(%arg0: i32) -> (i32, i32, i32) {
    %c0_i32 = arith.constant 0 : i32
    %c0_i32_0 = arith.constant 0 : i32
    %c0_i32_1 = arith.constant 0 : i32
    return %arg0, %c0_i32, %c0_i32_0 : i32, i32, i32
  }
  func.func @transform_1(%arg0: i32) -> (i32, i32) {
    %c0_i32 = arith.constant 0 : i32
    %c0_i32_0 = arith.constant 0 : i32
    %c0_i32_1 = arith.constant 0 : i32
    return %c0_i32, %c0_i32_0 : i32, i32
  }
  func.func @transform_2(%arg0: i32) -> (i32, i32) {
    %c0_i32 = arith.constant 0 : i32
    %c0_i32_0 = arith.constant 0 : i32
    %c0_i32_1 = arith.constant 0 : i32
    return %c0_i32, %c0_i32_0 : i32, i32
  }
  func.func @transform_3(%arg0: i32) -> (i32, i32) {
    %c0_i32 = arith.constant 0 : i32
    %c0_i32_0 = arith.constant 0 : i32
    %c0_i32_1 = arith.constant 0 : i32
    return %c0_i32, %c0_i32_0 : i32, i32
  }
  func.func @transform_4(%arg0: i32) -> (i32, i32) {
    %c0_i32 = arith.constant 0 : i32
    %c0_i32_0 = arith.constant 0 : i32
    %c0_i32_1 = arith.constant 0 : i32
    return %c0_i32, %c0_i32_0 : i32, i32
  }
  func.func @transform_5(%arg0: i32) -> (i32, i32, i32) {
    %c0_i32 = arith.constant 0 : i32
    %c0_i32_0 = arith.constant 0 : i32
    %c0_i32_1 = arith.constant 0 : i32
    return %arg0, %c0_i32, %c0_i32_0 : i32, i32, i32
  }
}

</mosaic_0001>

<llo_original>
// kernel: tpu_custom_call.1
$region0: #{tpu_custom_call.1}
  #allocation0 [shape = 'u32[]', space=smem, size = 0x4, offset = 0x4, fixed_abs, tag = 'smem constant byte address 0x4 - core index']
  #allocation1 [shape = 'u32[144,128]{1,0:T(1,128)}', space=vmem, size = 0x12000, scoped, tag = 'internal scratch']
  %s0 = inlined_call_operand.hbm [shape: f32[4,32,256], index: 0, kind: input, shape index: {}]
  %s1 = inlined_call_operand.vmem [shape: f32[32,2], index: 1, kind: input, shape index: {}]
  %s2 = inlined_call_operand.vmem [shape: f32[1,2], index: 2, kind: input, shape index: {}]
  %s3 = inlined_call_operand.vmem [shape: f32[2,32], index: 3, kind: input, shape index: {}]
  %s4 = inlined_call_operand.vmem [shape: f32[1,32], index: 4, kind: input, shape index: {}]
  %s5 = inlined_call_operand.hbm [shape: f32[4,32,256], index: 5, kind: output, shape index: {}]
  %s6 = sld [smem:[#allocation0]]
  $region34: #{tpu_custom_call.1} parent=0
    _
  %s8 = ssub.s32 1, %s6
  %s9 = scalar_select 0, %s8, %s6
  $region1: #{tpu_custom_call.1} parent=0
    #allocation2 [shape = 'u8[131072]{0}', space=vmem, size = 0x20000, scoped, tag = 'input window, operand 0, single buffered']
    #allocation3 [shape = 's32[1]{0}', space=sflag, size = 0x4, scoped, tag = 'scoped memory for tpu_custom_call.1']
    #allocation4 [shape = 's32[1]{0}', space=sflag, size = 0x4, scoped, tag = 'scoped memory for tpu_custom_call.1']
    #allocation5 [shape = 'u8[131072]{0}', space=vmem, size = 0x20000, scoped, tag = 'output window, operand 0, single buffered']
    %10 = vsyncpa [#allocation3], 0
    %11 = vsyncpa [#allocation4], 0
    // Predicated region
    $region2: #{tpu_custom_call.1} parent=1 // pred_check
      _
    $region3: #{tpu_custom_call.1} parent=1 // pred_check_branch
      %13 = sbr.rel (0) target = $region5
    $region4: #{tpu_custom_call.1} parent=1 // pred_region
      %s15 = ssub.s32 4096, 4096
      %16 = vsyncadd [#allocation3], %s15
      %s17 = sshll.u32 [#allocation2], 4
      %s18 = int_to_ptr.vmem [resolvable:$true] %s17
      %23 = dma.hbm_to_vmem [thread:$0]  %s0, 4096, %s18, [#allocation3], 256, 256, 16
    $region5: #{tpu_custom_call.1} parent=1 // pred_fallthru
      _
    // Predicated region
    $region6: #{tpu_custom_call.1} parent=1 // pred_check
      _
    $region7: #{tpu_custom_call.1} parent=1 // pred_check_branch
      %25 = sbr.rel (0) target = $region9
    $region8: #{tpu_custom_call.1} parent=1 // pred_region
      _
    $region9: #{tpu_custom_call.1} parent=1 // pred_fallthru
      _
    // Predicated region
    $region10: #{tpu_custom_call.1} parent=1 // pred_check
      _
    $region11: #{tpu_custom_call.1} parent=1 // pred_check_branch
      %27 = sbr.rel (0) target = $region13
    $region12: #{tpu_custom_call.1} parent=1 // pred_region
      _
    $region13: #{tpu_custom_call.1} parent=1 // pred_fallthru
      _
    // Predicated region
    $region14: #{tpu_custom_call.1} parent=1 // pred_check
      _
    $region15: #{tpu_custom_call.1} parent=1 // pred_check_branch
      %29 = sbr.rel (0) target = $region17
    $region16: #{tpu_custom_call.1} parent=1 // pred_region
      _
    $region17: #{tpu_custom_call.1} parent=1 // pred_fallthru
      _
    // Predicated region
    $region18: #{tpu_custom_call.1} parent=1 // pred_check
      _
    $region19: #{tpu_custom_call.1} parent=1 // pred_check_branch
      %31 = sbr.rel (0) target = $region21
    $region20: #{tpu_custom_call.1} parent=1 // pred_region
      _
    $region21: #{tpu_custom_call.1} parent=1 // pred_fallthru
      _
    // Predicated region
    $region22: #{tpu_custom_call.1} parent=1 // pred_check
      _
    $region23: #{tpu_custom_call.1} parent=1 // pred_check_branch
      %33 = sbr.rel (0) target = $region25
    $region24: #{tpu_custom_call.1} parent=1 // pred_region
      %34 = dma.done [#allocation3], 4096
    $region25: #{tpu_custom_call.1} parent=1 // pred_fallthru
      _
    %v35 = vld [vmem:[#allocation2] sm:$0xff]
    %v36 = vld [vmem:[#allocation2 + $0x8] sm:$0xff]
    %v37 = vld [vmem:[#allocation2 + $0x10] sm:$0xff]
    %v38 = vld [vmem:[#allocation2 + $0x18] sm:$0xff]
    %v39 = vld [vmem:[#allocation2 + $0x20] sm:$0xff]
    %v40 = vld [vmem:[#allocation2 + $0x28] sm:$0xff]
    %v41 = vld [vmem:[#allocation2 + $0x30] sm:$0xff]
    %v42 = vld [vmem:[#allocation2 + $0x38] sm:$0xff]
    %v43 = vld [vmem:[#allocation2 + $0x40] sm:$0xff]
    %v44 = vld [vmem:[#allocation2 + $0x48] sm:$0xff]
    %v45 = vld [vmem:[#allocation2 + $0x50] sm:$0xff]
    %v46 = vld [vmem:[#allocation2 + $0x58] sm:$0xff]
    %v47 = vld [vmem:[#allocation2 + $0x60] sm:$0xff]
    %v48 = vld [vmem:[#allocation2 + $0x68] sm:$0xff]
    %v49 = vld [vmem:[#allocation2 + $0x70] sm:$0xff]
    %v50 = vld [vmem:[#allocation2 + $0x78] sm:$0xff]
    %v51 = vld [vmem:[#allocation2 + $0x80] sm:$0xff]
    %v52 = vld [vmem:[#allocation2 + $0x88] sm:$0xff]
    %v53 = vld [vmem:[#allocation2 + $0x90] sm:$0xff]
    %v54 = vld [vmem:[#allocation2 + $0x98] sm:$0xff]
    %v55 = vld [vmem:[#allocation2 + $0xa0] sm:$0xff]
    %v56 = vld [vmem:[#allocation2 + $0xa8] sm:$0xff]
    %v57 = vld [vmem:[#allocation2 + $0xb0] sm:$0xff]
    %v58 = vld [vmem:[#allocation2 + $0xb8] sm:$0xff]
    %v59 = vld [vmem:[#allocation2 + $0xc0] sm:$0xff]
    %v60 = vld [vmem:[#allocation2 + $0xc8] sm:$0xff]
    %v61 = vld [vmem:[#allocation2 + $0xd0] sm:$0xff]
    %v62 = vld [vmem:[#allocation2 + $0xd8] sm:$0xff]
    %v63 = vld [vmem:[#allocation2 + $0xe0] sm:$0xff]
    %v64 = vld [vmem:[#allocation2 + $0xe8] sm:$0xff]
    %v65 = vld [vmem:[#allocation2 + $0xf0] sm:$0xff]
    %v66 = vld [vmem:[#allocation2 + $0xf8] sm:$0xff]
    %v67 = vadd.f32 %v35, %v36
    %68 = vadd.xlane.f32.xlu0 %v67
    %v69 = vpop.xlane.xlu0 %68
    %v70 = vadd.f32 %v37, %v38
    %71 = vadd.xlane.f32.xlu0 %v70
    %v72 = vpop.xlane.xlu0 %71
    %v73 = vadd.f32 %v39, %v40
    %74 = vadd.xlane.f32.xlu0 %v73
    %v75 = vpop.xlane.xlu0 %74
    %v76 = vadd.f32 %v41, %v42
    %77 = vadd.xlane.f32.xlu0 %v76
    %v78 = vpop.xlane.xlu0 %77
    %v79 = vadd.f32 %v43, %v44
    %80 = vadd.xlane.f32.xlu0 %v79
    %v81 = vpop.xlane.xlu0 %80
    %v82 = vadd.f32 %v45, %v46
    %83 = vadd.xlane.f32.xlu0 %v82
    %v84 = vpop.xlane.xlu0 %83
    %v85 = vadd.f32 %v47, %v48
    %86 = vadd.xlane.f32.xlu0 %v85
    %v87 = vpop.xlane.xlu0 %86
    %v88 = vadd.f32 %v49, %v50
    %89 = vadd.xlane.f32.xlu0 %v88
    %v90 = vpop.xlane.xlu0 %89
    %v91 = vadd.f32 %v51, %v52
    %92 = vadd.xlane.f32.xlu0 %v91
    %v93 = vpop.xlane.xlu0 %92
    %v94 = vadd.f32 %v53, %v54
    %95 = vadd.xlane.f32.xlu0 %v94
    %v96 = vpop.xlane.xlu0 %95
    %v97 = vadd.f32 %v55, %v56
    %98 = vadd.xlane.f32.xlu0 %v97
    %v99 = vpop.xlane.xlu0 %98
    %v100 = vadd.f32 %v57, %v58
    %101 = vadd.xlane.f32.xlu0 %v100
    %v102 = vpop.xlane.xlu0 %101
    %v103 = vadd.f32 %v59, %v60
    %104 = vadd.xlane.f32.xlu0 %v103
    %v105 = vpop.xlane.xlu0 %104
    %v106 = vadd.f32 %v61, %v62
    %107 = vadd.xlane.f32.xlu0 %v106
    %v108 = vpop.xlane.xlu0 %107
    %v109 = vadd.f32 %v63, %v64
    %110 = vadd.xlane.f32.xlu0 %v109
    %v111 = vpop.xlane.xlu0 %110
    %v112 = vadd.f32 %v65, %v66
    %113 = vadd.xlane.f32.xlu0 %v112
    %v114 = vpop.xlane.xlu0 %113
    %v115 = vmul.f32 %v69, 0.00390625
    %v116 = vmul.f32 %v72, 0.00390625
    %v117 = vmul.f32 %v75, 0.00390625
    %v118 = vmul.f32 %v78, 0.00390625
    %v119 = vmul.f32 %v81, 0.00390625
    %v120 = vmul.f32 %v84, 0.00390625
    %v121 = vmul.f32 %v87, 0.00390625
    %v122 = vmul.f32 %v90, 0.00390625
    %v123 = vmul.f32 %v93, 0.00390625
    %v124 = vmul.f32 %v96, 0.00390625
    %v125 = vmul.f32 %v99, 0.00390625
    %v126 = vmul.f32 %v102, 0.00390625
    %v127 = vmul.f32 %v105, 0.00390625
    %v128 = vmul.f32 %v108, 0.00390625
    %v129 = vmul.f32 %v111, 0.00390625
    %v130 = vmul.f32 %v114, 0.00390625
    %v131 = vld [vmem:[%s1] sm:$0xff]
    %v132 = vld [vmem:[%s1 + $0x8] sm:$0xff]
    %v133 = vld [vmem:[%s1 + $0x10] sm:$0xff]
    %v134 = vld [vmem:[%s1 + $0x18] sm:$0xff]
    %v135 = vld [vmem:[%s2] sm:$0x1]
    %v137 = vlaneseq
    %v138 = vshrl.u32 %v137, 7
    %v139 = vsub.s32 0, %v138
    %v140 = vrot.slane %v135, %v139
    %v158 = vlaneseq
    %v159 = vand.u32 %v158, 127
    %v160 = vlaneseq
    %v161 = vshrl.u32 %v160, 7
    %v162 = vsub.s32 %v159, %v161
    %v163 = vrot.slane %v115, %v162
    %v164 = vadd.s32 %v159, 4294967288
    %v165 = vlaneseq
    %v166 = vshrl.u32 %v165, 7
    %v167 = vsub.s32 %v164, %v166
    %v168 = vrot.slane %v116, %v167
    %vm169 = vcmask 130112
    %v170 = vsel %vm169, %v168, %v163
    %v171 = vadd.s32 %v159, 4294967280
    %v172 = vlaneseq
    %v173 = vshrl.u32 %v172, 7
    %v174 = vsub.s32 %v171, %v173
    %v175 = vrot.slane %v117, %v174
    %vm176 = vcmask 195712
    %v177 = vsel %vm176, %v175, %v170
    %v178 = vadd.s32 %v159, 4294967272
    %v179 = vlaneseq
    %v180 = vshrl.u32 %v179, 7
    %v181 = vsub.s32 %v178, %v180
    %v182 = vrot.slane %v118, %v181
    %vm183 = vcmask 261312
    %v184 = vsel %vm183, %v182, %v177
    %v185 = vlaneseq
    %v186 = vshrl.u32 %v185, 7
    %v187 = vsub.s32 %v159, %v186
    %v188 = vrot.slane %v119, %v187
    %v189 = vlaneseq
    %v190 = vshrl.u32 %v189, 7
    %v191 = vsub.s32 %v164, %v190
    %v192 = vrot.slane %v120, %v191
    %v193 = vsel %vm169, %v192, %v188
    %v194 = vlaneseq
    %v195 = vshrl.u32 %v194, 7
    %v196 = vsub.s32 %v171, %v195
    %v197 = vrot.slane %v121, %v196
    %v198 = vsel %vm176, %v197, %v193
    %v199 = vlaneseq
    %v200 = vshrl.u32 %v199, 7
    %v201 = vsub.s32 %v178, %v200
    %v202 = vrot.slane %v122, %v201
    %v203 = vsel %vm183, %v202, %v198
    %v204 = vlaneseq
    %v205 = vshrl.u32 %v204, 7
    %v206 = vsub.s32 %v159, %v205
    %v207 = vrot.slane %v123, %v206
    %v208 = vlaneseq
    %v209 = vshrl.u32 %v208, 7
    %v210 = vsub.s32 %v164, %v209
    %v211 = vrot.slane %v124, %v210
    %v212 = vsel %vm169, %v211, %v207
    %v213 = vlaneseq
    %v214 = vshrl.u32 %v213, 7
    %v215 = vsub.s32 %v171, %v214
    %v216 = vrot.slane %v125, %v215
    %v217 = vsel %vm176, %v216, %v212
    %v218 = vlaneseq
    %v219 = vshrl.u32 %v218, 7
    %v220 = vsub.s32 %v178, %v219
    %v221 = vrot.slane %v126, %v220
    %v222 = vsel %vm183, %v221, %v217
    %v223 = vlaneseq
    %v224 = vshrl.u32 %v223, 7
    %v225 = vsub.s32 %v159, %v224
    %v226 = vrot.slane %v127, %v225
    %v227 = vlaneseq
    %v228 = vshrl.u32 %v227, 7
    %v229 = vsub.s32 %v164, %v228
    %v230 = vrot.slane %v128, %v229
    %v231 = vsel %vm169, %v230, %v226
    %v232 = vlaneseq
    %v233 = vshrl.u32 %v232, 7
    %v234 = vsub.s32 %v171, %v233
    %v235 = vrot.slane %v129, %v234
    %v236 = vsel %vm176, %v235, %v231
    %v237 = vlaneseq
    %v238 = vshrl.u32 %v237, 7
    %v239 = vsub.s32 %v178, %v238
    %v240 = vrot.slane %v130, %v239
    %v241 = vsel %vm183, %v240, %v236
    %vm242 = vcmask 1041409
    %v243 = vsel %vm242, %v203, %v184
    %vm244 = vcmask 1042434
    %v245 = vsel %vm244, %v222, %v243
    %vm246 = vcmask 1043459
    %v247 = vsel %vm246, %v241, %v245
    %vm248 = vcmask 261120
    %v249 = vsel %vm248, %v247, 0
    %251 = vmatprep.subr.mxu0 0.0
    %252 = vmatpush1.msra.mxu0 0.0
    %253 = vmatprep.subr.mxu0 0.0
    %254 = vmatpush1.msra.mxu0 0.0
    %255 = vmatprep.subr.mxu0 0.0
    %256 = vmatpush1.msra.mxu0 0.0
    %257 = vmatprep.subr.mxu0 0.0
    %258 = vmatpush1.msra.mxu0 0.0
    %259 = vmatprep.subr.mxu0 0.0
    %260 = vmatpush1.msra.mxu0 0.0
    %261 = vmatprep.subr.mxu0 0.0
    %262 = vmatpush1.msra.mxu0 0.0
    %263 = vmatprep.subr.mxu0 0.0
    %264 = vmatpush1.msra.mxu0 0.0
    %265 = vmatprep.subr.mxu0 0.0
    %266 = vmatpush1.msra.mxu0 0.0
    %267 = vmatprep.subr.mxu0 0.0
    %268 = vmatpush1.msra.mxu0 0.0
    %269 = vmatprep.subr.mxu0 0.0
    %270 = vmatpush1.msra.mxu0 0.0
    %271 = vmatprep.subr.mxu0 0.0
    %272 = vmatpush1.msra.mxu0 0.0
    %273 = vmatprep.subr.mxu0 0.0
    %274 = vmatpush1.msra.mxu0 0.0
    %275 = vmatprep.subr.mxu0 0.0
    %276 = vmatpush1.msra.mxu0 %v134
    %277 = vmatprep.subr.mxu0 0.0
    %278 = vmatpush1.msra.mxu0 %v133
    %279 = vmatprep.subr.mxu0 0.0
    %280 = vmatpush1.msra.mxu0 %v132
    %281 = vmatprep.subr.mxu0 0.0
    %282 = vmatpush1.msra.mxu0 %v131
    %283 = vmatprep.subr.mxu0 0.0
    %284 = vmatpush2.msra.mxu0 0.0
    %285 = vmatprep.subr.mxu0 0.0
    %286 = vmatpush2.msra.mxu0 0.0
    %287 = vmatprep.subr.mxu0 0.0
    %288 = vmatpush2.msra.mxu0 0.0
    %289 = vmatprep.subr.mxu0 0.0
    %290 = vmatpush2.msra.mxu0 0.0
    %291 = vmatprep.subr.mxu0 0.0
    %292 = vmatpush2.msra.mxu0 0.0
    %293 = vmatprep.subr.mxu0 0.0
    %294 = vmatpush2.msra.mxu0 0.0
    %295 = vmatprep.subr.mxu0 0.0
    %296 = vmatpush2.msra.mxu0 0.0
    %297 = vmatprep.subr.mxu0 0.0
    %298 = vmatpush2.msra.mxu0 0.0
    %299 = vmatprep.subr.mxu0 0.0
    %300 = vmatpush2.msra.mxu0 0.0
    %301 = vmatprep.subr.mxu0 0.0
    %302 = vmatpush2.msra.mxu0 0.0
    %303 = vmatprep.subr.mxu0 0.0
    %304 = vmatpush2.msra.mxu0 0.0
    %305 = vmatprep.subr.mxu0 0.0
    %306 = vmatpush2.msra.mxu0 0.0
    %307 = vmatprep.subr.mxu0 0.0
    %308 = vmatpush2.msra.mxu0 0.0
    %309 = vmatprep.subr.mxu0 0.0
    %310 = vmatpush2.msra.mxu0 0.0
    %311 = vmatprep.subr.mxu0 0.0
    %312 = vmatpush2.msra.mxu0 0.0
    %313 = vmatprep.subr.mxu0 0.0
    %314 = vmatpush2.msra.mxu0 0.0
    %315 = vmatprep.mubr.f32.mxu0 0.0
    %316 = vmatmul.mubr.f32.gmra.mxu0 %v249
    %v317 = vpop.f32.mrf.mxu0
    %v318 = vadd.f32 %v140, %v317
    %v319 = vpop.f32.mrf.mxu0
    %320 = vdwg.mxu0
    %v321 = vmax.f32 %v318, 0.0
    %v322 = vld [vmem:[%s3] sm:$0x3]
    %v323 = vld [vmem:[%s4] sm:$0x1]
    %v325 = vlaneseq
    %v326 = vshrl.u32 %v325, 7
    %v327 = vsub.s32 0, %v326
    %v328 = vrot.slane %v323, %v327
    %vm330 = vcmask 15360
    %v332 = vsel %vm330, %v321, 0
    %vm334 = vcmask 1041408
    %v336 = vsel %vm334, %v322, 0
    %338 = vmatprep.subr.mxu0 0.0
    %339 = vmatpush1.msra.mxu0 0.0
    %340 = vmatprep.subr.mxu0 0.0
    %341 = vmatpush1.msra.mxu0 0.0
    %342 = vmatprep.subr.mxu0 0.0
    %343 = vmatpush1.msra.mxu0 0.0
    %344 = vmatprep.subr.mxu0 0.0
    %345 = vmatpush1.msra.mxu0 0.0
    %346 = vmatprep.subr.mxu0 0.0
    %347 = vmatpush1.msra.mxu0 0.0
    %348 = vmatprep.subr.mxu0 0.0
    %349 = vmatpush1.msra.mxu0 0.0
    %350 = vmatprep.subr.mxu0 0.0
    %351 = vmatpush1.msra.mxu0 0.0
    %352 = vmatprep.subr.mxu0 0.0
    %353 = vmatpush1.msra.mxu0 0.0
    %354 = vmatprep.subr.mxu0 0.0
    %355 = vmatpush1.msra.mxu0 0.0
    %356 = vmatprep.subr.mxu0 0.0
    %357 = vmatpush1.msra.mxu0 0.0
    %358 = vmatprep.subr.mxu0 0.0
    %359 = vmatpush1.msra.mxu0 0.0
    %360 = vmatprep.subr.mxu0 0.0
    %361 = vmatpush1.msra.mxu0 0.0
    %362 = vmatprep.subr.mxu0 0.0
    %363 = vmatpush1.msra.mxu0 0.0
    %364 = vmatprep.subr.mxu0 0.0
    %365 = vmatpush1.msra.mxu0 0.0
    %366 = vmatprep.subr.mxu0 0.0
    %367 = vmatpush1.msra.mxu0 0.0
    %368 = vmatprep.subr.mxu0 0.0
    %369 = vmatpush1.msra.mxu0 %v336
    %370 = vmatprep.subr.mxu0 0.0
    %371 = vmatpush2.msra.mxu0 0.0
    %372 = vmatprep.subr.mxu0 0.0
    %373 = vmatpush2.msra.mxu0 0.0
    %374 = vmatprep.subr.mxu0 0.0
    %375 = vmatpush2.msra.mxu0 0.0
    %376 = vmatprep.subr.mxu0 0.0
    %377 = vmatpush2.msra.mxu0 0.0
    %378 = vmatprep.subr.mxu0 0.0
    %379 = vmatpush2.msra.mxu0 0.0
    %380 = vmatprep.subr.mxu0 0.0
    %381 = vmatpush2.msra.mxu0 0.0
    %382 = vmatprep.subr.mxu0 0.0
    %383 = vmatpush2.msra.mxu0 0.0
    %384 = vmatprep.subr.mxu0 0.0
    %385 = vmatpush2.msra.mxu0 0.0
    %386 = vmatprep.subr.mxu0 0.0
    %387 = vmatpush2.msra.mxu0 0.0
    %388 = vmatprep.subr.mxu0 0.0
    %389 = vmatpush2.msra.mxu0 0.0
    %390 = vmatprep.subr.mxu0 0.0
    %391 = vmatpush2.msra.mxu0 0.0
    %392 = vmatprep.subr.mxu0 0.0
    %393 = vmatpush2.msra.mxu0 0.0
    %394 = vmatprep.subr.mxu0 0.0
    %395 = vmatpush2.msra.mxu0 0.0
    %396 = vmatprep.subr.mxu0 0.0
    %397 = vmatpush2.msra.mxu0 0.0
    %398 = vmatprep.subr.mxu0 0.0
    %399 = vmatpush2.msra.mxu0 0.0
    %400 = vmatprep.subr.mxu0 0.0
    %401 = vmatpush2.msra.mxu0 0.0
    %402 = vmatprep.mubr.f32.mxu0 0.0
    %403 = vmatmul.mubr.f32.gmra.mxu0 %v332
    %v404 = vpop.f32.mrf.mxu0
    %v405 = vadd.f32 %v328, %v404
    %v406 = vpop.f32.mrf.mxu0
    %407 = vdwg.mxu0
    %v408 = vxor.u32 %v405, 2147483648
    %v409 = vmul.f32 %v408, 1.442695
    %v410 = vpow.pop %v409
    %v411 = vadd.f32 %v410, 1.0
    %v412 = vrcp.pop %v411
    %v413 = vmul.f32 1.0, %v412
    %v414 = vlaneseq
    %v415 = vshrl.u32 %v414, 7
    %v416 = vsub.s32 0, %v415
    %v417 = vrot.slane %v413, %v416
    %419 = vbcast.lane.b32.xlu0 %v417, 256
    %v420 = vpop.permute.xlu0 %419
    %s422 = sor.u32 256, 8
    %423 = vbcast.lane.b32.xlu0 %v417, %s422
    %v424 = vpop.permute.xlu0 %423
    %s426 = sor.u32 256, 16
    %427 = vbcast.lane.b32.xlu0 %v417, %s426
    %v428 = vpop.permute.xlu0 %427
    %s430 = sor.u32 256, 24
    %431 = vbcast.lane.b32.xlu0 %v417, %s430
    %v432 = vpop.permute.xlu0 %431
    %v433 = vlaneseq
    %v434 = vshrl.u32 %v433, 7
    %v435 = vsub.s32 1, %v434
    %v436 = vrot.slane %v413, %v435
    %438 = vbcast.lane.b32.xlu0 %v436, 256
    %v439 = vpop.permute.xlu0 %438
    %s441 = sor.u32 256, 8
    %442 = vbcast.lane.b32.xlu0 %v436, %s441
    %v443 = vpop.permute.xlu0 %442
    %s445 = sor.u32 256, 16
    %446 = vbcast.lane.b32.xlu0 %v436, %s445
    %v447 = vpop.permute.xlu0 %446
    %s449 = sor.u32 256, 24
    %450 = vbcast.lane.b32.xlu0 %v436, %s449
    %v451 = vpop.permute.xlu0 %450
    %v452 = vlaneseq
    %v453 = vshrl.u32 %v452, 7
    %v454 = vsub.s32 2, %v453
    %v455 = vrot.slane %v413, %v454
    %457 = vbcast.lane.b32.xlu0 %v455, 256
    %v458 = vpop.permute.xlu0 %457
    %s460 = sor.u32 256, 8
    %461 = vbcast.lane.b32.xlu0 %v455, %s460
    %v462 = vpop.permute.xlu0 %461
    %s464 = sor.u32 256, 16
    %465 = vbcast.lane.b32.xlu0 %v455, %s464
    %v466 = vpop.permute.xlu0 %465
    %s468 = sor.u32 256, 24
    %469 = vbcast.lane.b32.xlu0 %v455, %s468
    %v470 = vpop.permute.xlu0 %469
    %v471 = vlaneseq
    %v472 = vshrl.u32 %v471, 7
    %v473 = vsub.s32 3, %v472
    %v474 = vrot.slane %v413, %v473
    %476 = vbcast.lane.b32.xlu0 %v474, 256
    %v477 = vpop.permute.xlu0 %476
    %s479 = sor.u32 256, 8
    %480 = vbcast.lane.b32.xlu0 %v474, %s479
    %v481 = vpop.permute.xlu0 %480
    %s483 = sor.u32 256, 16
    %484 = vbcast.lane.b32.xlu0 %v474, %s483
    %v485 = vpop.permute.xlu0 %484
    %s487 = sor.u32 256, 24
    %488 = vbcast.lane.b32.xlu0 %v474, %s487
    %v489 = vpop.permute.xlu0 %488
    %v490 = vmul.f32 %v35, %v420
    %v491 = vmul.f32 %v36, %v420
    %v492 = vmul.f32 %v37, %v424
    %v493 = vmul.f32 %v38, %v424
    %v494 = vmul.f32 %v39, %v428
    %v495 = vmul.f32 %v40, %v428
    %v496 = vmul.f32 %v41, %v432
    %v497 = vmul.f32 %v42, %v432
    %v498 = vmul.f32 %v43, %v439
    %v499 = vmul.f32 %v44, %v439
    %v500 = vmul.f32 %v45, %v443
    %v501 = vmul.f32 %v46, %v443
    %v502 = vmul.f32 %v47, %v447
    %v503 = vmul.f32 %v48, %v447
    %v504 = vmul.f32 %v49, %v451
    %v505 = vmul.f32 %v50, %v451
    %v506 = vmul.f32 %v51, %v458
    %v507 = vmul.f32 %v52, %v458
    %v508 = vmul.f32 %v53, %v462
    %v509 = vmul.f32 %v54, %v462
    %v510 = vmul.f32 %v55, %v466
    %v511 = vmul.f32 %v56, %v466
    %v512 = vmul.f32 %v57, %v470
    %v513 = vmul.f32 %v58, %v470
    %v514 = vmul.f32 %v59, %v477
    %v515 = vmul.f32 %v60, %v477
    %v516 = vmul.f32 %v61, %v481
    %v517 = vmul.f32 %v62, %v481
    %v518 = vmul.f32 %v63, %v485
    %v519 = vmul.f32 %v64, %v485
    %v520 = vmul.f32 %v65, %v489
    %v521 = vmul.f32 %v66, %v489
    %522 = vst [vmem:[#allocation5] sm:$0xff] %v490
    %523 = vst [vmem:[#allocation5 + $0x8] sm:$0xff] %v491
    %524 = vst [vmem:[#allocation5 + $0x10] sm:$0xff] %v492
    %525 = vst [vmem:[#allocation5 + $0x18] sm:$0xff] %v493
    %526 = vst [vmem:[#allocation5 + $0x20] sm:$0xff] %v494
    %527 = vst [vmem:[#allocation5 + $0x28] sm:$0xff] %v495
    %528 = vst [vmem:[#allocation5 + $0x30] sm:$0xff] %v496
    %529 = vst [vmem:[#allocation5 + $0x38] sm:$0xff] %v497
    %530 = vst [vmem:[#allocation5 + $0x40] sm:$0xff] %v498
    %531 = vst [vmem:[#allocation5 + $0x48] sm:$0xff] %v499
    %532 = vst [vmem:[#allocation5 + $0x50] sm:$0xff] %v500
    %533 = vst [vmem:[#allocation5 + $0x58] sm:$0xff] %v501
    %534 = vst [vmem:[#allocation5 + $0x60] sm:$0xff] %v502
    %535 = vst [vmem:[#allocation5 + $0x68] sm:$0xff] %v503
    %536 = vst [vmem:[#allocation5 + $0x70] sm:$0xff] %v504
    %537 = vst [vmem:[#allocation5 + $0x78] sm:$0xff] %v505
    %538 = vst [vmem:[#allocation5 + $0x80] sm:$0xff] %v506
    %539 = vst [vmem:[#allocation5 + $0x88] sm:$0xff] %v507
    %540 = vst [vmem:[#allocation5 + $0x90] sm:$0xff] %v508
    %541 = vst [vmem:[#allocation5 + $0x98] sm:$0xff] %v509
    %542 = vst [vmem:[#allocation5 + $0xa0] sm:$0xff] %v510
    %543 = vst [vmem:[#allocation5 + $0xa8] sm:$0xff] %v511
    %544 = vst [vmem:[#allocation5 + $0xb0] sm:$0xff] %v512
    %545 = vst [vmem:[#allocation5 + $0xb8] sm:$0xff] %v513
    %546 = vst [vmem:[#allocation5 + $0xc0] sm:$0xff] %v514
    %547 = vst [vmem:[#allocation5 + $0xc8] sm:$0xff] %v515
    %548 = vst [vmem:[#allocation5 + $0xd0] sm:$0xff] %v516
    %549 = vst [vmem:[#allocation5 + $0xd8] sm:$0xff] %v517
    %550 = vst [vmem:[#allocation5 + $0xe0] sm:$0xff] %v518
    %551 = vst [vmem:[#allocation5 + $0xe8] sm:$0xff] %v519
    %552 = vst [vmem:[#allocation5 + $0xf0] sm:$0xff] %v520
    %553 = vst [vmem:[#allocation5 + $0xf8] sm:$0xff] %v521
    // Predicated region
    $region26: #{tpu_custom_call.1} parent=1 // pred_check
      _
    $region27: #{tpu_custom_call.1} parent=1 // pred_check_branch
      %555 = sbr.rel (0) target = $region29
    $region28: #{tpu_custom_call.1} parent=1 // pred_region
      %s557 = ssub.s32 4096, 4096
      %558 = vsyncadd [#allocation4], %s557
      %s559 = sshll.u32 [#allocation5], 4
      %s560 = int_to_ptr.vmem [resolvable:$true] %s559
      %565 = dma.vmem_to_hbm [thread:$0]  %s560, 4096, %s5, [#allocation4], 256, 256, 16
    $region29: #{tpu_custom_call.1} parent=1 // pred_fallthru
      _
    // Predicated region
    $region30: #{tpu_custom_call.1} parent=1 // pred_check
      _
    $region31: #{tpu_custom_call.1} parent=1 // pred_check_branch
      %567 = sbr.rel (0) target = $region33
    $region32: #{tpu_custom_call.1} parent=1 // pred_region
      %568 = dma.done [#allocation4], 4096
    $region33: #{tpu_custom_call.1} parent=1 // pred_fallthru
      _
    %569 = vsyncpa [#allocation3], 1
    %570 = vsyncpa [#allocation4], 1

</llo_original>
